<compile_context>
chip_gen: v6e
topology: v6e:2x2x1
jax: 0.10.0
libtpu: 0.0.40
codegen_flags: <defaults>
</compile_context>

<pallas_src>
import math

import jax
import jax.numpy as jnp
from jax.experimental import pallas as pl
from jax.experimental.pallas import tpu as pltpu


BOND_ANGLE_FLOAT_NAMES = ['bond_angle', 'TPSA', 'RASA', 'RPSA', 'MDEC', 'MATS']
N_FEATS = len(BOND_ANGLE_FLOAT_NAMES)          # 6
N_OTHER = N_FEATS - 1                          # 5

MAX_BLOCK_S = 8192                             # max (packed) rows per grid step
DATA_VMEM_BUDGET = 13 << 20                    # double-buffered in+out data budget
VMEM_LIMIT_BYTES = 32 << 20                    # explicit scoped-VMEM limit


def _rbf_kernel_packed(feat_ref, selbd_ref, w1bd_ref, centers_ref, w0bd_ref,
                       bias_ref, out_ref):
    """Packed path: g original rows per 128-lane output row.

    feat_ref    : (bs, 6g)   packed float features
    selbd_ref   : (6g, 32g)  sqrt(gamma) * block-diag selection (broadcast bond_angle)
    w1bd_ref    : (6g, gE)   block-diag W1 (bond_angle row zeroed)
    centers_ref : (1, 32g)   sqrt(gamma) * per-group-tiled centers
    w0bd_ref    : (32g, gE)  block-diag W0
    bias_ref    : (1, gE)    per-group-tiled (b0 + b1)
    out_ref     : (bs, gE)   lane-dense packed output
    """
    feat = feat_ref[...]
    # Two separate MXU dots -> no lane-misaligned slicing of a fused result.
    x0 = jnp.dot(feat, selbd_ref[...], preferred_element_type=jnp.float32)
    lin1 = jnp.dot(feat, w1bd_ref[...], preferred_element_type=jnp.float32)
    d = x0 - centers_ref[...]
    rbf = jnp.exp(-(d * d))                    # == exp(-gamma * (x - c)^2)
    out_ref[...] = (jnp.dot(rbf, w0bd_ref[...], preferred_element_type=jnp.float32)
                    + lin1 + bias_ref[...])


def _rbf_kernel_wide(feat_ref, sg_ref, w1f_ref, centers_ref, w0_ref, bias_ref,
                     out_ref):
    """g == 1 path (embed_dim >= 128 or not a divisor of 128).

    The bond_angle column is broadcast on the VPU (no K=6 MXU selection push).
    sg_ref is sqrt(gamma) in SMEM; centers_ref is already scaled by sqrt(gamma).
    """
    feat = feat_ref[...]
    x0 = feat[:, 0:1] * sg_ref[0]                       # (bs, 1)
    lin1 = jnp.dot(feat, w1f_ref[...], preferred_element_type=jnp.float32)
    d = x0 - centers_ref[...]                           # (bs, 32)
    rbf = jnp.exp(-(d * d))
    out_ref[...] = (jnp.dot(rbf, w0_ref[...], preferred_element_type=jnp.float32)
                    + lin1 + bias_ref[...])


def _block_diag(w, g):
    """g copies of w on a block diagonal: (K, M) -> (g*K, g*M)."""
    if g == 1:
        return w
    k, m = w.shape
    eye = jnp.eye(g, dtype=w.dtype)
    return (eye[:, None, :, None] * w[None, :, None, :]).reshape(g * k, g * m)


def _pick_block_s(rows, in_cols, out_cols):
    """Largest sublane-aligned tile under the VMEM data budget / MAX_BLOCK_S."""
    row_bytes = 8 * (in_cols + out_cols)       # f32, double-buffered in + out
    vmem_cap = max(8, ((DATA_VMEM_BUDGET // row_bytes) // 8) * 8)
    rows_up = ((rows + 7) // 8) * 8
    return max(8, min(MAX_BLOCK_S, vmem_cap, rows_up))


@jax.jit
def bond_angle_float_rbf(feat, centers, gamma, w0, b0, w1, b1):
    """feat: (N, 6) f32.  w0: (32, E) (= W0^T), w1: (5, E), b0/b1: (1, E) or (E,).

    Returns (N, E) float32 == Linear0(RBF(feat[:, 0])) + Linear1(feat[:, 1:]).
    """
    n, nf = feat.shape
    nc, e = w0.shape
    feat = feat.astype(jnp.float32)
    w0 = w0.astype(jnp.float32)
    w1 = w1.astype(jnp.float32)
    bias = (b0.reshape(1, e).astype(jnp.float32)
            + b1.reshape(1, e).astype(jnp.float32))                       # (1, E)
    sg = jnp.sqrt(jnp.asarray(gamma, jnp.float32).reshape(-1)[0])         # gamma >= 0
    cvec = jnp.asarray(centers, jnp.float32).reshape(1, nc)

    # Pack g rows per output row so the output is 128 lanes wide (lane-dense stores).
    g = 128 // e if (e < 128 and 128 % e == 0) else 1

    compiler_params = pltpu.CompilerParams(
        dimension_semantics=("parallel",),
        vmem_limit_bytes=VMEM_LIMIT_BYTES)

    if g > 1:
        # Keep packing even for ragged N: pad to a multiple of g, slice afterwards.
        pad = (-n) % g
        if pad:
            feat = jnp.concatenate(
                [feat, jnp.zeros((pad, nf), jnp.float32)], axis=0)
        n_pad = n + pad
        np_rows = n_pad // g
        kf, kc, eo = nf * g, nc * g, e * g
        feat_p = feat.reshape(np_rows, kf)                 # free row-major reshape

        sel = jnp.zeros((nf, nc), jnp.float32).at[0, :].set(sg)           # (6, 32)
        w1f = jnp.zeros((nf, e), jnp.float32).at[1:, :].set(w1)           # (6, E)
        selbd = _block_diag(sel, g)                                       # (6g, 32g)
        w1bd = _block_diag(w1f, g)                                        # (6g, gE)
        w0bd = _block_diag(w0, g)                                         # (32g, gE)
        centers_t = jnp.tile(sg * cvec, (1, g))                           # (1, 32g)
        bias_t = jnp.tile(bias, (1, g))                                   # (1, gE)

        block_s = _pick_block_s(np_rows, kf, eo)
        grid = (pl.cdiv(np_rows, block_s),)                # ragged last block masked

        out = pl.pallas_call(
            _rbf_kernel_packed,
            out_shape=jax.ShapeDtypeStruct((np_rows, eo), jnp.float32),
            grid_spec=pltpu.PrefetchScalarGridSpec(
                num_scalar_prefetch=0,
                grid=grid,
                in_specs=[
                    pl.BlockSpec((block_s, kf), lambda i: (i, 0)),  # packed features
                    pl.BlockSpec((kf, kc), lambda i: (0, 0)),       # block-diag selection
                    pl.BlockSpec((kf, eo), lambda i: (0, 0)),       # block-diag W1
                    pl.BlockSpec((1, kc), lambda i: (0, 0)),        # scaled tiled centers
                    pl.BlockSpec((kc, eo), lambda i: (0, 0)),       # block-diag W0
                    pl.BlockSpec((1, eo), lambda i: (0, 0)),        # combined bias
                ],
                out_specs=pl.BlockSpec((block_s, eo), lambda i: (i, 0)),
            ),
            compiler_params=compiler_params,
        )(feat_p, selbd, w1bd, centers_t, w0bd, bias_t)

        out = out.reshape(n_pad, e)
        return out[:n] if pad else out

    # ---- g == 1 path (E >= 128 or E does not divide 128) ----
    w1f = jnp.zeros((nf, e), jnp.float32).at[1:, :].set(w1)               # (6, E)
    centers_s = sg * cvec                                                 # (1, 32)
    sg_arr = sg.reshape(1)

    block_s = _pick_block_s(n, nf, e)
    grid = (pl.cdiv(n, block_s),)

    return pl.pallas_call(
        _rbf_kernel_wide,
        out_shape=jax.ShapeDtypeStruct((n, e), jnp.float32),
        grid_spec=pltpu.PrefetchScalarGridSpec(
            num_scalar_prefetch=0,
            grid=grid,
            in_specs=[
                pl.BlockSpec((block_s, nf), lambda i: (i, 0)),            # features
                pl.BlockSpec(memory_space=pltpu.MemorySpace.SMEM),        # sqrt(gamma)
                pl.BlockSpec((nf, e), lambda i: (0, 0)),                  # W1 (lifted)
                pl.BlockSpec((1, nc), lambda i: (0, 0)),                  # scaled centers
                pl.BlockSpec((nc, e), lambda i: (0, 0)),                  # W0
                pl.BlockSpec((1, e), lambda i: (0, 0)),                   # combined bias
            ],
            out_specs=pl.BlockSpec((block_s, e), lambda i: (i, 0)),
        ),
        compiler_params=compiler_params,
    )(feat, sg_arr, w1f, centers_s, w0, bias)


def init_params(embed_dim, key):
    """Deterministic synthetic parameters matching the PyTorch module shapes."""
    k0, k1, k2, k3 = jax.random.split(key, 4)
    centers = jnp.arange(0.0, math.pi, 0.1, dtype=jnp.float32).reshape(1, -1)  # (1, 32)
    gamma = jnp.array([10.0], dtype=jnp.float32)                               # (1,)
    n_centers = centers.shape[1]
    # nn.Linear(len(centers), embed_dim): weight (embed_dim, 32); we store W^T.
    lim0 = 1.0 / math.sqrt(n_centers)
    w0 = jax.random.uniform(k0, (n_centers, embed_dim), jnp.float32, -lim0, lim0)
    b0 = jax.random.uniform(k1, (1, embed_dim), jnp.float32, -lim0, lim0)
    # nn.Linear(5, embed_dim)
    lim1 = 1.0 / math.sqrt(N_OTHER)
    w1 = jax.random.uniform(k2, (N_OTHER, embed_dim), jnp.float32, -lim1, lim1)
    b1 = jax.random.uniform(k3, (1, embed_dim), jnp.float32, -lim1, lim1)
    return centers, gamma, w0, b0, w1, b1


def reference_forward(feat, centers, gamma, w0, b0, w1, b1):
    """Pure-JAX reference of the PyTorch forward."""
    x0 = feat[:, 0:1]
    rbf = jnp.exp(-gamma[0] * jnp.square(x0 - centers))
    return rbf @ w0 + b0 + feat[:, 1:] @ w1 + b1


if __name__ == "__main__":
    embed_dim = 32
    n_rows = 70   # not a multiple of g=4 -> exercises the pad-N / packed ragged path
    key = jax.random.PRNGKey(0)
    k_feat, k_par = jax.random.split(key)

    feat = jax.random.uniform(k_feat, (n_rows, N_FEATS), jnp.float32, 0.0, math.pi)
    centers, gamma, w0, b0, w1, b1 = init_params(embed_dim, k_par)

    out = bond_angle_float_rbf(feat, centers, gamma, w0, b0, w1, b1)
    out = jax.block_until_ready(out)

    ref = reference_forward(feat, centers, gamma, w0, b0, w1, b1)
    assert out.shape == (n_rows, embed_dim)
    assert jnp.allclose(out, ref, atol=1e-4, rtol=1e-4), float(jnp.max(jnp.abs(out - ref)))
    print("KERNEL_OK")
</pallas_src>

<mosaic_0001>
module attributes {stable_mosaic.version = 11 : i64} {
  func.func @_rbf_kernel_packed(%arg0: i32, %arg1: memref<24x24xf32, #tpu.memory_space<vmem>>, %arg2: memref<24x128xf32, #tpu.memory_space<vmem>>, %arg3: memref<24x128xf32, #tpu.memory_space<vmem>>, %arg4: memref<1x128xf32, #tpu.memory_space<vmem>>, %arg5: memref<128x128xf32, #tpu.memory_space<vmem>>, %arg6: memref<1x128xf32, #tpu.memory_space<vmem>>, %arg7: memref<24x128xf32, #tpu.memory_space<vmem>>) attributes {dimension_semantics = [#tpu.dimension_semantics<parallel>], iteration_bounds = array<i64: 1>, scalar_prefetch = 0 : i64, scratch_operands = 0 : i64, tpu.core_type = #tpu.core_type<tc>, window_params = [{transform_indices = @transform_0, window_bounds = array<i64: 24, 24>}, {pipeline_mode = #tpu.pipeline_mode<synchronous>, transform_indices = @transform_1, window_bounds = array<i64: 24, 128>}, {pipeline_mode = #tpu.pipeline_mode<synchronous>, transform_indices = @transform_2, window_bounds = array<i64: 24, 128>}, {pipeline_mode = #tpu.pipeline_mode<synchronous>, transform_indices = @transform_3, window_bounds = array<i64: 1, 128>}, {pipeline_mode = #tpu.pipeline_mode<synchronous>, transform_indices = @transform_4, window_bounds = array<i64: 128, 128>}, {pipeline_mode = #tpu.pipeline_mode<synchronous>, transform_indices = @transform_5, window_bounds = array<i64: 1, 128>}, {transform_indices = @transform_6, window_bounds = array<i64: 24, 128>}]} {
    %c0 = arith.constant 0 : index
    %c0_0 = arith.constant 0 : index
    %0 = vector.load %arg1[%c0, %c0_0] : memref<24x24xf32, #tpu.memory_space<vmem>>, vector<24x24xf32>
    %c0_1 = arith.constant 0 : index
    %c0_2 = arith.constant 0 : index
    %1 = vector.load %arg2[%c0_1, %c0_2] : memref<24x128xf32, #tpu.memory_space<vmem>>, vector<24x128xf32>
    %cst = arith.constant dense<0.000000e+00> : vector<24x128xf32>
    %2 = tpu.matmul %0, %1, %cst {dimension_numbers = #tpu.dot_dimension_numbers<[1], [0], [0], [1], [0, 0, 1, 1], [], []>} : vector<24x24xf32>, vector<24x128xf32>, vector<24x128xf32> -> vector<24x128xf32>
    %c0_3 = arith.constant 0 : index
    %c0_4 = arith.constant 0 : index
    %3 = vector.load %arg3[%c0_3, %c0_4] : memref<24x128xf32, #tpu.memory_space<vmem>>, vector<24x128xf32>
    %cst_5 = arith.constant dense<0.000000e+00> : vector<24x128xf32>
    %4 = tpu.matmul %0, %3, %cst_5 {dimension_numbers = #tpu.dot_dimension_numbers<[1], [0], [0], [1], [0, 0, 1, 1], [], []>} : vector<24x24xf32>, vector<24x128xf32>, vector<24x128xf32> -> vector<24x128xf32>
    %c0_6 = arith.constant 0 : index
    %c0_7 = arith.constant 0 : index
    %5 = vector.load %arg4[%c0_6, %c0_7] : memref<1x128xf32, #tpu.memory_space<vmem>>, vector<1x128xf32>
    %6 = vector.broadcast %5 : vector<1x128xf32> to vector<24x128xf32>
    %7 = arith.subf %2, %6 : vector<24x128xf32>
    %8 = arith.mulf %7, %7 : vector<24x128xf32>
    %cst_8 = arith.constant 0.000000e+00 : f32
    %9 = vector.broadcast %cst_8 : f32 to vector<24x128xf32>
    %10 = arith.subf %9, %8 : vector<24x128xf32>
    %11 = math.exp %10 : vector<24x128xf32>
    %c0_9 = arith.constant 0 : index
    %c0_10 = arith.constant 0 : index
    %12 = vector.load %arg5[%c0_9, %c0_10] : memref<128x128xf32, #tpu.memory_space<vmem>>, vector<128x128xf32>
    %cst_11 = arith.constant dense<0.000000e+00> : vector<24x128xf32>
    %13 = tpu.matmul %11, %12, %cst_11 {dimension_numbers = #tpu.dot_dimension_numbers<[1], [0], [0], [1], [0, 0, 1, 1], [], []>} : vector<24x128xf32>, vector<128x128xf32>, vector<24x128xf32> -> vector<24x128xf32>
    %14 = arith.addf %13, %4 : vector<24x128xf32>
    %c0_12 = arith.constant 0 : index
    %c0_13 = arith.constant 0 : index
    %15 = vector.load %arg6[%c0_12, %c0_13] : memref<1x128xf32, #tpu.memory_space<vmem>>, vector<1x128xf32>
    %16 = vector.broadcast %15 : vector<1x128xf32> to vector<24x128xf32>
    %17 = arith.addf %14, %16 : vector<24x128xf32>
    %c0_14 = arith.constant 0 : index
    %c0_15 = arith.constant 0 : index
    %18 = vector.load %arg7[%c0_14, %c0_15] : memref<24x128xf32, #tpu.memory_space<vmem>>, vector<24x128xf32>
    tpu.vector_store %arg7[%c0_14, %c0_15], %17 {strides = array<i32>} : memref<24x128xf32, #tpu.memory_space<vmem>>, vector<24x128xf32>,
    return
  }
  func.func @transform_0(%arg0: i32) -> (i32, i32) {
    %c0_i32 = arith.constant 0 : i32
    %c0_i32_0 = arith.constant 0 : i32
    return %arg0, %c0_i32 : i32, i32
  }
  func.func @transform_1(%arg0: i32) -> (i32, i32) {
    %c0_i32 = arith.constant 0 : i32
    %c0_i32_0 = arith.constant 0 : i32
    %c0_i32_1 = arith.constant 0 : i32
    return %c0_i32, %c0_i32_0 : i32, i32
  }
  func.func @transform_2(%arg0: i32) -> (i32, i32) {
    %c0_i32 = arith.constant 0 : i32
    %c0_i32_0 = arith.constant 0 : i32
    %c0_i32_1 = arith.constant 0 : i32
    return %c0_i32, %c0_i32_0 : i32, i32
  }
  func.func @transform_3(%arg0: i32) -> (i32, i32) {
    %c0_i32 = arith.constant 0 : i32
    %c0_i32_0 = arith.constant 0 : i32
    %c0_i32_1 = arith.constant 0 : i32
    return %c0_i32, %c0_i32_0 : i32, i32
  }
  func.func @transform_4(%arg0: i32) -> (i32, i32) {
    %c0_i32 = arith.constant 0 : i32
    %c0_i32_0 = arith.constant 0 : i32
    %c0_i32_1 = arith.constant 0 : i32
    return %c0_i32, %c0_i32_0 : i32, i32
  }
  func.func @transform_5(%arg0: i32) -> (i32, i32) {
    %c0_i32 = arith.constant 0 : i32
    %c0_i32_0 = arith.constant 0 : i32
    %c0_i32_1 = arith.constant 0 : i32
    return %c0_i32, %c0_i32_0 : i32, i32
  }
  func.func @transform_6(%arg0: i32) -> (i32, i32) {
    %c0_i32 = arith.constant 0 : i32
    %c0_i32_0 = arith.constant 0 : i32
    return %arg0, %c0_i32 : i32, i32
  }
}

</mosaic_0001>

<llo_original>
// kernel: bond_angle_float_rbf.1
$region0: #{bond_angle_float_rbf.1}
  #allocation0 [shape = 'u32[]', space=smem, size = 0x4, offset = 0x4, fixed_abs, tag = 'smem constant byte address 0x4 - core index']
  #allocation1 [shape = 'u32[144,128]{1,0:T(1,128)}', space=vmem, size = 0x12000, scoped, tag = 'internal scratch']
  %s0 = inlined_call_operand.vmem [shape: f32[18,24], index: 0, kind: input, shape index: {}]
  %s1 = inlined_call_operand.vmem [shape: f32[24,128], index: 1, kind: input, shape index: {}]
  %s2 = inlined_call_operand.vmem [shape: f32[24,128], index: 2, kind: input, shape index: {}]
  %s3 = inlined_call_operand.vmem [shape: f32[1,128], index: 3, kind: input, shape index: {}]
  %s4 = inlined_call_operand.vmem [shape: f32[128,128], index: 4, kind: input, shape index: {}]
  %s5 = inlined_call_operand.vmem [shape: f32[1,128], index: 5, kind: input, shape index: {}]
  %s6 = inlined_call_operand.vmem [shape: f32[18,128], index: 6, kind: output, shape index: {}]
  %s7 = sld [smem:[#allocation0]]
  $region34: #{bond_angle_float_rbf.1} parent=0
    _
  %s9 = ssub.s32 1, %s7
  %s10 = scalar_select 0, %s9, %s7
  // Predicated region
  $region2: #{bond_angle_float_rbf.1} parent=0 // pred_check
    _
  $region3: #{bond_angle_float_rbf.1} parent=0 // pred_check_branch
    %12 = sbr.rel (0) target = $region5
  $region4: #{bond_angle_float_rbf.1} parent=0 // pred_region
    _
  $region5: #{bond_angle_float_rbf.1} parent=0 // pred_fallthru
    _
  // Predicated region
  $region6: #{bond_angle_float_rbf.1} parent=0 // pred_check
    _
  $region7: #{bond_angle_float_rbf.1} parent=0 // pred_check_branch
    %14 = sbr.rel (0) target = $region9
  $region8: #{bond_angle_float_rbf.1} parent=0 // pred_region
    _
  $region9: #{bond_angle_float_rbf.1} parent=0 // pred_fallthru
    _
  // Predicated region
  $region10: #{bond_angle_float_rbf.1} parent=0 // pred_check
    _
  $region11: #{bond_angle_float_rbf.1} parent=0 // pred_check_branch
    %16 = sbr.rel (0) target = $region13
  $region12: #{bond_angle_float_rbf.1} parent=0 // pred_region
    _
  $region13: #{bond_angle_float_rbf.1} parent=0 // pred_fallthru
    _
  // Predicated region
  $region14: #{bond_angle_float_rbf.1} parent=0 // pred_check
    _
  $region15: #{bond_angle_float_rbf.1} parent=0 // pred_check_branch
    %18 = sbr.rel (0) target = $region17
  $region16: #{bond_angle_float_rbf.1} parent=0 // pred_region
    _
  $region17: #{bond_angle_float_rbf.1} parent=0 // pred_fallthru
    _
  // Predicated region
  $region18: #{bond_angle_float_rbf.1} parent=0 // pred_check
    _
  $region19: #{bond_angle_float_rbf.1} parent=0 // pred_check_branch
    %20 = sbr.rel (0) target = $region21
  $region20: #{bond_angle_float_rbf.1} parent=0 // pred_region
    _
  $region21: #{bond_angle_float_rbf.1} parent=0 // pred_fallthru
    _
  // Predicated region
  $region22: #{bond_angle_float_rbf.1} parent=0 // pred_check
    _
  $region23: #{bond_angle_float_rbf.1} parent=0 // pred_check_branch
    %22 = sbr.rel (0) target = $region25
  $region24: #{bond_angle_float_rbf.1} parent=0 // pred_region
    _
  $region25: #{bond_angle_float_rbf.1} parent=0 // pred_fallthru
    _
  %v23 = vld [vmem:[%s0] sm:$0xff]
  %v24 = vld [vmem:[%s0 + $0x8] sm:$0xff]
  %v25 = vld [vmem:[%s0 + $0x10] sm:$0xff]
  %v26 = vld [vmem:[%s1] sm:$0xff]
  %v27 = vld [vmem:[%s1 + $0x8] sm:$0xff]
  %v28 = vld [vmem:[%s1 + $0x10] sm:$0xff]
  %vm29 = vcmask 195584
  %v31 = vsel %vm29, %v23, 0
  %v34 = vsel %vm29, %v24, 0
  %v37 = vsel %vm29, %v25, 0
  %39 = vmatprep.subr.mxu0 0.0
  %40 = vmatpush1.msra.mxu0 0.0
  %41 = vmatprep.subr.mxu0 0.0
  %42 = vmatpush1.msra.mxu0 0.0
  %43 = vmatprep.subr.mxu0 0.0
  %44 = vmatpush1.msra.mxu0 0.0
  %45 = vmatprep.subr.mxu0 0.0
  %46 = vmatpush1.msra.mxu0 0.0
  %47 = vmatprep.subr.mxu0 0.0
  %48 = vmatpush1.msra.mxu0 0.0
  %49 = vmatprep.subr.mxu0 0.0
  %50 = vmatpush1.msra.mxu0 0.0
  %51 = vmatprep.subr.mxu0 0.0
  %52 = vmatpush1.msra.mxu0 0.0
  %53 = vmatprep.subr.mxu0 0.0
  %54 = vmatpush1.msra.mxu0 0.0
  %55 = vmatprep.subr.mxu0 0.0
  %56 = vmatpush1.msra.mxu0 0.0
  %57 = vmatprep.subr.mxu0 0.0
  %58 = vmatpush1.msra.mxu0 0.0
  %59 = vmatprep.subr.mxu0 0.0
  %60 = vmatpush1.msra.mxu0 0.0
  %61 = vmatprep.subr.mxu0 0.0
  %62 = vmatpush1.msra.mxu0 0.0
  %63 = vmatprep.subr.mxu0 0.0
  %64 = vmatpush1.msra.mxu0 0.0
  %65 = vmatprep.subr.mxu0 0.0
  %66 = vmatpush1.msra.mxu0 %v28
  %67 = vmatprep.subr.mxu0 0.0
  %68 = vmatpush1.msra.mxu0 %v27
  %69 = vmatprep.subr.mxu0 0.0
  %70 = vmatpush1.msra.mxu0 %v26
  %71 = vmatprep.subr.mxu0 0.0
  %72 = vmatpush2.msra.mxu0 0.0
  %73 = vmatprep.subr.mxu0 0.0
  %74 = vmatpush2.msra.mxu0 0.0
  %75 = vmatprep.subr.mxu0 0.0
  %76 = vmatpush2.msra.mxu0 0.0
  %77 = vmatprep.subr.mxu0 0.0
  %78 = vmatpush2.msra.mxu0 0.0
  %79 = vmatprep.subr.mxu0 0.0
  %80 = vmatpush2.msra.mxu0 0.0
  %81 = vmatprep.subr.mxu0 0.0
  %82 = vmatpush2.msra.mxu0 0.0
  %83 = vmatprep.subr.mxu0 0.0
  %84 = vmatpush2.msra.mxu0 0.0
  %85 = vmatprep.subr.mxu0 0.0
  %86 = vmatpush2.msra.mxu0 0.0
  %87 = vmatprep.subr.mxu0 0.0
  %88 = vmatpush2.msra.mxu0 0.0
  %89 = vmatprep.subr.mxu0 0.0
  %90 = vmatpush2.msra.mxu0 0.0
  %91 = vmatprep.subr.mxu0 0.0
  %92 = vmatpush2.msra.mxu0 0.0
  %93 = vmatprep.subr.mxu0 0.0
  %94 = vmatpush2.msra.mxu0 0.0
  %95 = vmatprep.subr.mxu0 0.0
  %96 = vmatpush2.msra.mxu0 0.0
  %97 = vmatprep.subr.mxu0 0.0
  %98 = vmatpush2.msra.mxu0 0.0
  %99 = vmatprep.subr.mxu0 0.0
  %100 = vmatpush2.msra.mxu0 0.0
  %101 = vmatprep.subr.mxu0 0.0
  %102 = vmatpush2.msra.mxu0 0.0
  %103 = vmatprep.mubr.f32.mxu0 0.0
  %104 = vmatmul.mubr.f32.gmra.mxu0 %v31
  %v105 = vpop.f32.mrf.mxu0
  %v106 = vadd.f32 0.0, %v105
  %v107 = vpop.f32.mrf.mxu0
  %108 = vmatprep.mubr.f32.mxu0 0.0
  %109 = vmatmul.mubr.f32.gmra.mxu0 %v34
  %v110 = vpop.f32.mrf.mxu0
  %v111 = vadd.f32 0.0, %v110
  %v112 = vpop.f32.mrf.mxu0
  %113 = vmatprep.mubr.f32.mxu0 0.0
  %114 = vmatmul.mubr.f32.gmra.mxu0 %v37
  %v115 = vpop.f32.mrf.mxu0
  %v116 = vadd.f32 0.0, %v115
  %v117 = vpop.f32.mrf.mxu0
  %118 = vdwg.mxu0
  %v119 = vld [vmem:[%s2] sm:$0xff]
  %v120 = vld [vmem:[%s2 + $0x8] sm:$0xff]
  %v121 = vld [vmem:[%s2 + $0x10] sm:$0xff]
  %122 = vmatprep.subr.mxu0 0.0
  %123 = vmatpush1.msra.mxu0 0.0
  %124 = vmatprep.subr.mxu0 0.0
  %125 = vmatpush1.msra.mxu0 0.0
  %126 = vmatprep.subr.mxu0 0.0
  %127 = vmatpush1.msra.mxu0 0.0
  %128 = vmatprep.subr.mxu0 0.0
  %129 = vmatpush1.msra.mxu0 0.0
  %130 = vmatprep.subr.mxu0 0.0
  %131 = vmatpush1.msra.mxu0 0.0
  %132 = vmatprep.subr.mxu0 0.0
  %133 = vmatpush1.msra.mxu0 0.0
  %134 = vmatprep.subr.mxu0 0.0
  %135 = vmatpush1.msra.mxu0 0.0
  %136 = vmatprep.subr.mxu0 0.0
  %137 = vmatpush1.msra.mxu0 0.0
  %138 = vmatprep.subr.mxu0 0.0
  %139 = vmatpush1.msra.mxu0 0.0
  %140 = vmatprep.subr.mxu0 0.0
  %141 = vmatpush1.msra.mxu0 0.0
  %142 = vmatprep.subr.mxu0 0.0
  %143 = vmatpush1.msra.mxu0 0.0
  %144 = vmatprep.subr.mxu0 0.0
  %145 = vmatpush1.msra.mxu0 0.0
  %146 = vmatprep.subr.mxu0 0.0
  %147 = vmatpush1.msra.mxu0 0.0
  %148 = vmatprep.subr.mxu0 0.0
  %149 = vmatpush1.msra.mxu0 %v121
  %150 = vmatprep.subr.mxu0 0.0
  %151 = vmatpush1.msra.mxu0 %v120
  %152 = vmatprep.subr.mxu0 0.0
  %153 = vmatpush1.msra.mxu0 %v119
  %154 = vmatprep.subr.mxu0 0.0
  %155 = vmatpush2.msra.mxu0 0.0
  %156 = vmatprep.subr.mxu0 0.0
  %157 = vmatpush2.msra.mxu0 0.0
  %158 = vmatprep.subr.mxu0 0.0
  %159 = vmatpush2.msra.mxu0 0.0
  %160 = vmatprep.subr.mxu0 0.0
  %161 = vmatpush2.msra.mxu0 0.0
  %162 = vmatprep.subr.mxu0 0.0
  %163 = vmatpush2.msra.mxu0 0.0
  %164 = vmatprep.subr.mxu0 0.0
  %165 = vmatpush2.msra.mxu0 0.0
  %166 = vmatprep.subr.mxu0 0.0
  %167 = vmatpush2.msra.mxu0 0.0
  %168 = vmatprep.subr.mxu0 0.0
  %169 = vmatpush2.msra.mxu0 0.0
  %170 = vmatprep.subr.mxu0 0.0
  %171 = vmatpush2.msra.mxu0 0.0
  %172 = vmatprep.subr.mxu0 0.0
  %173 = vmatpush2.msra.mxu0 0.0
  %174 = vmatprep.subr.mxu0 0.0
  %175 = vmatpush2.msra.mxu0 0.0
  %176 = vmatprep.subr.mxu0 0.0
  %177 = vmatpush2.msra.mxu0 0.0
  %178 = vmatprep.subr.mxu0 0.0
  %179 = vmatpush2.msra.mxu0 0.0
  %180 = vmatprep.subr.mxu0 0.0
  %181 = vmatpush2.msra.mxu0 0.0
  %182 = vmatprep.subr.mxu0 0.0
  %183 = vmatpush2.msra.mxu0 0.0
  %184 = vmatprep.subr.mxu0 0.0
  %185 = vmatpush2.msra.mxu0 0.0
  %186 = vmatprep.mubr.f32.mxu0 0.0
  %187 = vmatmul.mubr.f32.gmra.mxu0 %v31
  %v188 = vpop.f32.mrf.mxu0
  %v189 = vadd.f32 0.0, %v188
  %v190 = vpop.f32.mrf.mxu0
  %191 = vmatprep.mubr.f32.mxu0 0.0
  %192 = vmatmul.mubr.f32.gmra.mxu0 %v34
  %v193 = vpop.f32.mrf.mxu0
  %v194 = vadd.f32 0.0, %v193
  %v195 = vpop.f32.mrf.mxu0
  %196 = vmatprep.mubr.f32.mxu0 0.0
  %197 = vmatmul.mubr.f32.gmra.mxu0 %v37
  %v198 = vpop.f32.mrf.mxu0
  %v199 = vadd.f32 0.0, %v198
  %v200 = vpop.f32.mrf.mxu0
  %201 = vdwg.mxu0
  %v202 = vld [vmem:[%s3] sm:$0x1]
  %v204 = vlaneseq
  %v205 = vshrl.u32 %v204, 7
  %v206 = vsub.s32 0, %v205
  %v207 = vrot.slane %v202, %v206
  %v209 = vsub.f32 %v106, %v207
  %v210 = vsub.f32 %v111, %v207
  %v211 = vsub.f32 %v116, %v207
  %v212 = vmul.f32 %v209, %v209
  %v213 = vmul.f32 %v210, %v210
  %v214 = vmul.f32 %v211, %v211
  %v215 = vsub.f32 0.0, %v212
  %v216 = vsub.f32 0.0, %v213
  %v217 = vsub.f32 0.0, %v214
  %v218 = vmul.f32 %v215, 1.442695
  %v219 = vpow.pop %v218
  %v220 = vmul.f32 %v216, 1.442695
  %v221 = vpow.pop %v220
  %v222 = vmul.f32 %v217, 1.442695
  %v223 = vpow.pop %v222
  %v224 = vld [vmem:[%s4] sm:$0xff]
  %v225 = vld [vmem:[%s4 + $0x8] sm:$0xff]
  %v226 = vld [vmem:[%s4 + $0x10] sm:$0xff]
  %v227 = vld [vmem:[%s4 + $0x18] sm:$0xff]
  %v228 = vld [vmem:[%s4 + $0x20] sm:$0xff]
  %v229 = vld [vmem:[%s4 + $0x28] sm:$0xff]
  %v230 = vld [vmem:[%s4 + $0x30] sm:$0xff]
  %v231 = vld [vmem:[%s4 + $0x38] sm:$0xff]
  %v232 = vld [vmem:[%s4 + $0x40] sm:$0xff]
  %v233 = vld [vmem:[%s4 + $0x48] sm:$0xff]
  %v234 = vld [vmem:[%s4 + $0x50] sm:$0xff]
  %v235 = vld [vmem:[%s4 + $0x58] sm:$0xff]
  %v236 = vld [vmem:[%s4 + $0x60] sm:$0xff]
  %v237 = vld [vmem:[%s4 + $0x68] sm:$0xff]
  %v238 = vld [vmem:[%s4 + $0x70] sm:$0xff]
  %v239 = vld [vmem:[%s4 + $0x78] sm:$0xff]
  %240 = vmatprep.subr.mxu0 0.0
  %241 = vmatpush1.msra.mxu0 %v239
  %242 = vmatprep.subr.mxu0 0.0
  %243 = vmatpush1.msra.mxu0 %v238
  %244 = vmatprep.subr.mxu0 0.0
  %245 = vmatpush1.msra.mxu0 %v237
  %246 = vmatprep.subr.mxu0 0.0
  %247 = vmatpush1.msra.mxu0 %v236
  %248 = vmatprep.subr.mxu0 0.0
  %249 = vmatpush1.msra.mxu0 %v235
  %250 = vmatprep.subr.mxu0 0.0
  %251 = vmatpush1.msra.mxu0 %v234
  %252 = vmatprep.subr.mxu0 0.0
  %253 = vmatpush1.msra.mxu0 %v233
  %254 = vmatprep.subr.mxu0 0.0
  %255 = vmatpush1.msra.mxu0 %v232
  %256 = vmatprep.subr.mxu0 0.0
  %257 = vmatpush1.msra.mxu0 %v231
  %258 = vmatprep.subr.mxu0 0.0
  %259 = vmatpush1.msra.mxu0 %v230
  %260 = vmatprep.subr.mxu0 0.0
  %261 = vmatpush1.msra.mxu0 %v229
  %262 = vmatprep.subr.mxu0 0.0
  %263 = vmatpush1.msra.mxu0 %v228
  %264 = vmatprep.subr.mxu0 0.0
  %265 = vmatpush1.msra.mxu0 %v227
  %266 = vmatprep.subr.mxu0 0.0
  %267 = vmatpush1.msra.mxu0 %v226
  %268 = vmatprep.subr.mxu0 0.0
  %269 = vmatpush1.msra.mxu0 %v225
  %270 = vmatprep.subr.mxu0 0.0
  %271 = vmatpush1.msra.mxu0 %v224
  %272 = vmatprep.subr.mxu0 0.0
  %273 = vmatpush2.msra.mxu0 0.0
  %274 = vmatprep.subr.mxu0 0.0
  %275 = vmatpush2.msra.mxu0 0.0
  %276 = vmatprep.subr.mxu0 0.0
  %277 = vmatpush2.msra.mxu0 0.0
  %278 = vmatprep.subr.mxu0 0.0
  %279 = vmatpush2.msra.mxu0 0.0
  %280 = vmatprep.subr.mxu0 0.0
  %281 = vmatpush2.msra.mxu0 0.0
  %282 = vmatprep.subr.mxu0 0.0
  %283 = vmatpush2.msra.mxu0 0.0
  %284 = vmatprep.subr.mxu0 0.0
  %285 = vmatpush2.msra.mxu0 0.0
  %286 = vmatprep.subr.mxu0 0.0
  %287 = vmatpush2.msra.mxu0 0.0
  %288 = vmatprep.subr.mxu0 0.0
  %289 = vmatpush2.msra.mxu0 0.0
  %290 = vmatprep.subr.mxu0 0.0
  %291 = vmatpush2.msra.mxu0 0.0
  %292 = vmatprep.subr.mxu0 0.0
  %293 = vmatpush2.msra.mxu0 0.0
  %294 = vmatprep.subr.mxu0 0.0
  %295 = vmatpush2.msra.mxu0 0.0
  %296 = vmatprep.subr.mxu0 0.0
  %297 = vmatpush2.msra.mxu0 0.0
  %298 = vmatprep.subr.mxu0 0.0
  %299 = vmatpush2.msra.mxu0 0.0
  %300 = vmatprep.subr.mxu0 0.0
  %301 = vmatpush2.msra.mxu0 0.0
  %302 = vmatprep.subr.mxu0 0.0
  %303 = vmatpush2.msra.mxu0 0.0
  %304 = vmatprep.mubr.f32.mxu0 0.0
  %305 = vmatmul.mubr.f32.gmra.mxu0 %v219
  %v306 = vpop.f32.mrf.mxu0
  %v307 = vadd.f32 %v189, %v306
  %v308 = vpop.f32.mrf.mxu0
  %309 = vmatprep.mubr.f32.mxu0 0.0
  %310 = vmatmul.mubr.f32.gmra.mxu0 %v221
  %v311 = vpop.f32.mrf.mxu0
  %v312 = vadd.f32 %v194, %v311
  %v313 = vpop.f32.mrf.mxu0
  %314 = vmatprep.mubr.f32.mxu0 0.0
  %315 = vmatmul.mubr.f32.gmra.mxu0 %v223
  %v316 = vpop.f32.mrf.mxu0
  %v317 = vadd.f32 %v199, %v316
  %v318 = vpop.f32.mrf.mxu0
  %319 = vdwg.mxu0
  %v320 = vld [vmem:[%s5] sm:$0x1]
  %v322 = vlaneseq
  %v323 = vshrl.u32 %v322, 7
  %v324 = vsub.s32 0, %v323
  %v325 = vrot.slane %v320, %v324
  %v327 = vadd.f32 %v307, %v325
  %v328 = vadd.f32 %v312, %v325
  %v329 = vadd.f32 %v317, %v325
  %330 = vst [vmem:[%s6] sm:$0xff] %v327
  %331 = vst [vmem:[%s6 + $0x8] sm:$0xff] %v328
  %332 = vst [vmem:[%s6 + $0x10] sm:$0xff] %v329
  // Predicated region
  $region26: #{bond_angle_float_rbf.1} parent=0 // pred_check
    _
  $region27: #{bond_angle_float_rbf.1} parent=0 // pred_check_branch
    %334 = sbr.rel (0) target = $region29
  $region28: #{bond_angle_float_rbf.1} parent=0 // pred_region
    _
  $region29: #{bond_angle_float_rbf.1} parent=0 // pred_fallthru
    _
  // Predicated region
  $region30: #{bond_angle_float_rbf.1} parent=0 // pred_check
    _
  $region31: #{bond_angle_float_rbf.1} parent=0 // pred_check_branch
    %336 = sbr.rel (0) target = $region33
  $region32: #{bond_angle_float_rbf.1} parent=0 // pred_region
    _
  $region33: #{bond_angle_float_rbf.1} parent=0 // pred_fallthru
    _

</llo_original>
